<compile_context>
chip_gen: v7x
topology: tpu7x:2x2x1
jax: 0.10.0
libtpu: 0.0.40
codegen_flags: <defaults>
</compile_context>

<pallas_src>
import functools

import jax
import jax.numpy as jnp
from jax.experimental import pallas as pl
from jax.experimental.pallas import tpu as pltpu


_OUT_SUB = 8      # sublane footprint of each per-tile partial-sum block
_OUT_LANE = 128   # lane footprint of each per-tile partial-sum block
_MIB = 1024 * 1024


def _round_up(x, m):
    return ((x + m - 1) // m) * m


def _round_down(x, m):
    return (x // m) * m


def _sublane_multiple(dtype) -> int:
    """Minimum sublane tile multiple for the given dtype (8/16/32)."""
    return {4: 8, 2: 16, 1: 32}.get(jnp.dtype(dtype).itemsize, 8)


def _vmem_capacity_bytes() -> int:
    """Per-core VMEM capacity; falls back to the v7x-safe 64 MiB."""
    try:
        info = pltpu.get_tpu_info()
        cap = int(getattr(info, "vmem_capacity_bytes", 0))
        if cap > 0:
            return cap
    except Exception:
        pass
    return 64 * _MIB


def _fold_factor(batch: int, width: int, sub: int) -> int:
    """Largest divisor m of `batch` so that the free row-major reshape
    (B, S) -> (B//m, m*S) yields a reasonably lane-dense last dim, while
    keeping enough folded rows for >= 2 sublane-aligned tiles when possible."""
    if width >= 128:          # already lane-dense enough; folding buys nothing
        return 1
    m_cap = max(1, -(-1024 // width))          # folded width up to ~1024 lanes
    if batch >= 4 * sub:                       # keep rows for >=2 aligned tiles
        m_cap = min(m_cap, batch // (2 * sub))
    m_cap = max(1, min(m_cap, batch))
    best = 1
    for m in range(1, m_cap + 1):
        if batch % m == 0:
            best = m
    return best


def _ccl_kernel(y_ref, colmask_ref, out_ref, *, margin, neg_scale,
                valid_rows, block_rows, needs_row_mask):
    """One folded-row tile: fused relu / column select / scale + partial sum."""
    y = y_ref[...].astype(jnp.float32)                       # (R, W)
    # (1, W) f32 mask, resident in VMEM; broadcast (sublane dir) then compare.
    is_pos = jnp.broadcast_to(colmask_ref[...], y.shape) > 0.5

    pos = jnp.maximum(1.0 - y, 0.0)                 # relu(1 - y)      (col % S == 0)
    neg = jnp.maximum(y - margin, 0.0) * neg_scale  # w/N * relu(y-m)  (other cols)
    contrib = jnp.where(is_pos, pos, neg)

    if needs_row_mask:
        # Only emitted when the last grid tile is partial (R % block_rows != 0):
        # mask grid-padding rows that carry stale VMEM garbage.
        row = (jax.lax.broadcasted_iota(jnp.int32, contrib.shape, 0)
               + pl.program_id(0) * block_rows)
        contrib = jnp.where(row < valid_rows, contrib, 0.0)

    # Sublane-axis reduction first (mostly VPU adds), then one cross-lane reduce.
    col_sums = jnp.sum(contrib, axis=0, keepdims=True)       # (1, W)
    part = jnp.sum(col_sums, axis=1, keepdims=True)          # (1, 1)
    out_ref[...] = jnp.broadcast_to(part, (_OUT_SUB, _OUT_LANE))


def cosine_contrastive_loss(y_pred, y_true=None, *, margin: float,
                            negative_weight: float,
                            block_rows: int | None = None,
                            fold: int | None = None):
    """Mean-reduced SimpleX cosine contrastive loss (matches the PyTorch module).

    y_pred: (batch, 1 + num_negatives) cosine similarities (f32 or bf16).
    y_true: dummy placeholder (unused), kept for API parity with the module.
    """
    del y_true
    if not -1.0 < margin < 1.0:
        raise ValueError("margin of cosine similarity does not fall into (-1, 1)")
    if negative_weight < 0:
        raise ValueError("weight on loss from negative samples cannot be negative")

    B, S = y_pred.shape
    n_neg = S - 1
    if n_neg < 1:
        raise ValueError("y_pred must have at least one negative-sample column")

    itemsize = jnp.dtype(y_pred.dtype).itemsize
    sub = _sublane_multiple(y_pred.dtype)

    # ---- free lane densification: (B, S) -> (B//m, m*S) ----
    m = _fold_factor(B, S, sub) if fold is None else int(fold)
    if m < 1 or B % m != 0:
        raise ValueError("fold must be a positive divisor of the batch size")
    W = m * S
    R = B // m
    y2d = jnp.reshape(y_pred, (R, W))   # row-major reinterpretation, no data movement

    # 1.0 on lanes holding the positive-sample column, 0.0 elsewhere (tiny, resident).
    colmask = (jnp.arange(W, dtype=jnp.int32) % S == 0).astype(jnp.float32)[None, :]

    lane_pad = _round_up(W, 128)
    row_bytes = lane_pad * itemsize

    # ---- generation-aware VMEM budgets ----
    vmem_cap = _vmem_capacity_bytes()
    gen_cap = min(100 * _MIB, (vmem_cap * 3) // 4)       # ~48 MiB v7x, ~96 MiB v5e/v6e
    per_buf = min(8 * _MIB, max(2 * _MIB, vmem_cap // 16))

    # ---- block_rows: VMEM-budget-driven, dtype-aware, >=2 tiles when possible ----
    if block_rows is None:
        br = max(sub, _round_down(per_buf // row_bytes, sub))
        if br >= R:
            br = R
        # v7x megacore: make the 1-D "parallel" grid span both TensorCores.
        if pl.cdiv(R, br) == 1 and R >= 2 * sub:
            br = _round_up(pl.cdiv(R, 2), sub)
        # clamp the tile itself (not just vmem_limit) to the generation budget.
        while br > sub and 2 * br * row_bytes > gen_cap:
            br = max(sub, _round_down(br // 2, sub))
        block_rows = br
    else:
        block_rows = int(block_rows)
        if block_rows < 1:
            raise ValueError("block_rows must be positive")
        if block_rows >= R:
            block_rows = R
        elif block_rows % sub != 0:
            raise ValueError(
                f"block_rows must be a multiple of {sub} for dtype "
                f"{jnp.dtype(y_pred.dtype).name} (or >= the folded row count)")

    n_tiles = pl.cdiv(R, block_rows)
    needs_row_mask = (R % block_rows) != 0

    # ---- scoped-VMEM: only raise above the 32 MiB platform default when needed ----
    tile_bytes = block_rows * row_bytes
    needed = (2 * tile_bytes                      # double-buffered input tile
              + 2 * lane_pad * 4                  # resident column mask
              + 2 * _OUT_SUB * _OUT_LANE * 4      # output block buffers
              + 2 * _MIB)                         # headroom
    compiler_kwargs = dict(dimension_semantics=("parallel",))
    if needed > 32 * _MIB:
        compiler_kwargs["vmem_limit_bytes"] = int(min(needed, gen_cap))

    kernel = functools.partial(
        _ccl_kernel,
        margin=float(margin),
        neg_scale=float(negative_weight) / float(n_neg),
        valid_rows=R,
        block_rows=block_rows,
        needs_row_mask=needs_row_mask,
    )

    out = pl.pallas_call(
        kernel,
        out_shape=jax.ShapeDtypeStruct((n_tiles * _OUT_SUB, _OUT_LANE), jnp.float32),
        grid=(n_tiles,),
        in_specs=[
            pl.BlockSpec((block_rows, W), lambda i: (i, 0)),
            pl.BlockSpec((1, W), lambda i: (0, 0)),   # constant block -> DMA'd once
        ],
        out_specs=pl.BlockSpec((_OUT_SUB, _OUT_LANE), lambda i: (i, 0)),
        compiler_params=pltpu.CompilerParams(**compiler_kwargs),
    )(y2d, colmask)

    partials = out.reshape(n_tiles, _OUT_SUB, _OUT_LANE)[:, 0, 0]   # (n_tiles,)
    return jnp.sum(partials) / B


def _reference(y_pred, margin, negative_weight):
    y = y_pred.astype(jnp.float32)
    pos = jnp.maximum(1.0 - y[:, 0], 0.0)
    neg = jnp.mean(jnp.maximum(y[:, 1:] - margin, 0.0), axis=1) * negative_weight
    return jnp.mean(pos + neg)


if __name__ == "__main__":
    margin = 0.4
    negative_weight = 0.5
    k0, k1, k2 = jax.random.split(jax.random.PRNGKey(0), 3)

    # Case 1: module-spec shape (batch=8, 1 positive + 8 negatives), f32.
    # Fold folds all 8 rows into one lane-dense row of width 72.
    y_small = jax.random.uniform(k0, (8, 9), dtype=jnp.float32, minval=-1.0, maxval=1.0)
    loss = jax.block_until_ready(
        cosine_contrastive_loss(y_small, margin=margin, negative_weight=negative_weight))
    ref = _reference(y_small, margin, negative_weight)
    assert jnp.allclose(loss, ref, atol=1e-5, rtol=1e-5), (loss, ref)

    # Case 2: bf16, folded view (fold=3 -> (40, 27)), forced multi-tile grid with a
    # partial last tile (block_rows=16 -> 3 tiles, 8 valid rows in the last one).
    y_bf16 = jax.random.uniform(k1, (120, 9), dtype=jnp.float32,
                                minval=-1.0, maxval=1.0).astype(jnp.bfloat16)
    loss = jax.block_until_ready(
        cosine_contrastive_loss(y_bf16, margin=margin, negative_weight=negative_weight,
                                block_rows=16))
    ref = _reference(y_bf16, margin, negative_weight)
    assert jnp.allclose(loss, ref, atol=1e-5, rtol=1e-5), (loss, ref)

    # Case 3: wide similarity dim (S >= 128 -> no fold), auto two-tile split
    # (megacore) + padded-row masking on the last tile.
    y_wide = jax.random.uniform(k2, (20, 130), dtype=jnp.float32, minval=-1.0, maxval=1.0)
    loss = jax.block_until_ready(
        cosine_contrastive_loss(y_wide, margin=margin, negative_weight=negative_weight))
    ref = _reference(y_wide, margin, negative_weight)
    assert jnp.allclose(loss, ref, atol=1e-5, rtol=1e-5), (loss, ref)

    print("KERNEL_OK")
</pallas_src>

<mosaic_0001>
module attributes {stable_mosaic.version = 11 : i64} {
  func.func @_ccl_kernel(%arg0: i32, %arg1: memref<1x72xf32, #tpu.memory_space<vmem>>, %arg2: memref<1x72xf32, #tpu.memory_space<vmem>>, %arg3: memref<8x128xf32, #tpu.memory_space<vmem>>) attributes {dimension_semantics = [#tpu.dimension_semantics<parallel>], iteration_bounds = array<i64: 1>, scalar_prefetch = 0 : i64, scratch_operands = 0 : i64, tpu.core_type = #tpu.core_type<tc>, window_params = [{transform_indices = @transform_0, window_bounds = array<i64: 1, 72>}, {pipeline_mode = #tpu.pipeline_mode<synchronous>, transform_indices = @transform_1, window_bounds = array<i64: 1, 72>}, {transform_indices = @transform_2, window_bounds = array<i64: 8, 128>}]} {
    %c0 = arith.constant 0 : index
    %c0_0 = arith.constant 0 : index
    %0 = vector.load %arg1[%c0, %c0_0] : memref<1x72xf32, #tpu.memory_space<vmem>>, vector<1x72xf32>
    %c0_1 = arith.constant 0 : index
    %c0_2 = arith.constant 0 : index
    %1 = vector.load %arg2[%c0_1, %c0_2] : memref<1x72xf32, #tpu.memory_space<vmem>>, vector<1x72xf32>
    %cst = arith.constant 5.000000e-01 : f32
    %2 = vector.broadcast %cst : f32 to vector<1x72xf32>
    %3 = arith.cmpf ogt, %1, %2 : vector<1x72xf32>
    %cst_3 = arith.constant 1.000000e+00 : f32
    %4 = vector.broadcast %cst_3 : f32 to vector<1x72xf32>
    %5 = arith.subf %4, %0 : vector<1x72xf32>
    %cst_4 = arith.constant 0.000000e+00 : f32
    %6 = vector.broadcast %cst_4 : f32 to vector<1x72xf32>
    %7 = arith.maximumf %5, %6 : vector<1x72xf32>
    %cst_5 = arith.constant 4.000000e-01 : f32
    %8 = vector.broadcast %cst_5 : f32 to vector<1x72xf32>
    %9 = arith.subf %0, %8 : vector<1x72xf32>
    %cst_6 = arith.constant 0.000000e+00 : f32
    %10 = vector.broadcast %cst_6 : f32 to vector<1x72xf32>
    %11 = arith.maximumf %9, %10 : vector<1x72xf32>
    %cst_7 = arith.constant 6.250000e-02 : f32
    %12 = vector.broadcast %cst_7 : f32 to vector<1x72xf32>
    %13 = arith.mulf %11, %12 : vector<1x72xf32>
    %14 = arith.select %3, %7, %13 : vector<1x72xi1>, vector<1x72xf32>
    %cst_8 = arith.constant dense<0.000000e+00> : vector<72xf32>
    %15 = vector.multi_reduction <add>, %14, %cst_8 [0] : vector<1x72xf32> to vector<72xf32>
    %16 = vector.shape_cast %15 : vector<72xf32> to vector<1x72xf32>
    %cst_9 = arith.constant dense<0.000000e+00> : vector<1xf32>
    %17 = vector.multi_reduction <add>, %16, %cst_9 [1] : vector<1x72xf32> to vector<1xf32>
    %18 = vector.shape_cast %17 : vector<1xf32> to vector<1x1xf32>
    %19 = vector.shape_cast %18 : vector<1x1xf32> to vector<1x1xf32>
    %20 = vector.broadcast %19 : vector<1x1xf32> to vector<8x128xf32>
    %c0_10 = arith.constant 0 : index
    %c0_11 = arith.constant 0 : index
    %21 = vector.load %arg3[%c0_10, %c0_11] : memref<8x128xf32, #tpu.memory_space<vmem>>, vector<8x128xf32>
    tpu.vector_store %arg3[%c0_10, %c0_11], %20 {strides = array<i32>} : memref<8x128xf32, #tpu.memory_space<vmem>>, vector<8x128xf32>,
    return
  }
  func.func @transform_0(%arg0: i32) -> (i32, i32) {
    %c0_i32 = arith.constant 0 : i32
    %c0_i32_0 = arith.constant 0 : i32
    return %arg0, %c0_i32 : i32, i32
  }
  func.func @transform_1(%arg0: i32) -> (i32, i32) {
    %c0_i32 = arith.constant 0 : i32
    %c0_i32_0 = arith.constant 0 : i32
    %c0_i32_1 = arith.constant 0 : i32
    return %c0_i32, %c0_i32_0 : i32, i32
  }
  func.func @transform_2(%arg0: i32) -> (i32, i32) {
    %c0_i32 = arith.constant 0 : i32
    %c0_i32_0 = arith.constant 0 : i32
    return %arg0, %c0_i32 : i32, i32
  }
}

</mosaic_0001>

<llo_original>
// kernel: tpu_custom_call.1
$region0: #{tpu_custom_call.1}
  #allocation0 [shape = 'u32[]', space=smem, size = 0x4, offset = 0x4, fixed_abs, tag = 'smem constant byte address 0x4 - core index']
  #allocation1 [shape = 'u32[144,128]{1,0:T(1,128)}', space=vmem, size = 0x12000, scoped, tag = 'internal scratch']
  %s0 = inlined_call_operand.hbm [shape: f32[1,72], index: 0, kind: input, shape index: {}]
  %s1 = inlined_call_operand.vmem [shape: f32[1,72], index: 1, kind: input, shape index: {}]
  %s2 = inlined_call_operand.hbm [shape: f32[8,128], index: 2, kind: output, shape index: {}]
  %s3 = sld [smem:[#allocation0]]
  $region22: #{tpu_custom_call.1} parent=0
    _
  %s5 = ssub.s32 1, %s3
  %s6 = scalar_select 0, %s5, %s3
  $region1: #{tpu_custom_call.1} parent=0
    #allocation2 [shape = 'u8[512]{0}', space=vmem, size = 0x400, scoped, tag = 'input window, operand 0, single buffered']
    #allocation3 [shape = 's32[1]{0}', space=sflag, size = 0x4, scoped, tag = 'scoped memory for tpu_custom_call.1']
    #allocation4 [shape = 's32[1]{0}', space=sflag, size = 0x4, scoped, tag = 'scoped memory for tpu_custom_call.1']
    #allocation5 [shape = 'u8[4096]{0}', space=vmem, size = 0x1000, scoped, tag = 'output window, operand 0, single buffered']
    %7 = vsyncpa [#allocation3], 0
    %8 = vsyncpa [#allocation4], 0
    // Predicated region
    $region2: #{tpu_custom_call.1} parent=1 // pred_check
      _
    $region3: #{tpu_custom_call.1} parent=1 // pred_check_branch
      %10 = sbr.rel (0) target = $region5
    $region4: #{tpu_custom_call.1} parent=1 // pred_region
      %s12 = ssub.s32 16, 16
      %13 = vsyncadd [#allocation3], %s12
      %s15 = sshll.u32 [#allocation2], 4
      %s16 = int_to_ptr.vmem [resolvable:$true] %s15
      %18 = dma.hbm_to_vmem [thread:$0]  %s0, 16, %s16, [#allocation3]
    $region5: #{tpu_custom_call.1} parent=1 // pred_fallthru
      _
    // Predicated region
    $region6: #{tpu_custom_call.1} parent=1 // pred_check
      _
    $region7: #{tpu_custom_call.1} parent=1 // pred_check_branch
      %20 = sbr.rel (0) target = $region9
    $region8: #{tpu_custom_call.1} parent=1 // pred_region
      _
    $region9: #{tpu_custom_call.1} parent=1 // pred_fallthru
      _
    // Predicated region
    $region10: #{tpu_custom_call.1} parent=1 // pred_check
      _
    $region11: #{tpu_custom_call.1} parent=1 // pred_check_branch
      %22 = sbr.rel (0) target = $region13
    $region12: #{tpu_custom_call.1} parent=1 // pred_region
      %23 = dma.done [#allocation3], 16
    $region13: #{tpu_custom_call.1} parent=1 // pred_fallthru
      _
    %v24 = vld [vmem:[#allocation2] sm:$0x1]
    %v25 = vld [vmem:[%s1] sm:$0x1]
    %vm26 = vcmp.gt.f32.partialorder %v25, 0.5
    %v27 = vsub.f32 1.0, %v24
    %v28 = vmax.f32 %v27, 0.0
    %v29 = vsub.f32 %v24, 0.4
    %v30 = vmax.f32 %v29, 0.0
    %v31 = vmul.f32 %v30, 0.0625
    %v32 = vsel %vm26, %v28, %v31
    %v33 = vadd.f32 %v32, 0.0
    %vm34 = vcmask 581632
    %v35 = vsel %vm34, %v33, 0.0
    %36 = vadd.xlane.f32.xlu0 %v35
    %v37 = vpop.xlane.xlu0 %36
    %v38 = vlaneseq
    %v39 = vshrl.u32 %v38, 7
    %v40 = vsub.s32 0, %v39
    %v41 = vrot.slane %v37, %v40
    %42 = vst [vmem:[#allocation5] sm:$0xff] %v41
    // Predicated region
    $region14: #{tpu_custom_call.1} parent=1 // pred_check
      _
    $region15: #{tpu_custom_call.1} parent=1 // pred_check_branch
      %44 = sbr.rel (0) target = $region17
    $region16: #{tpu_custom_call.1} parent=1 // pred_region
      %s46 = ssub.s32 128, 128
      %47 = vsyncadd [#allocation4], %s46
      %s49 = sshll.u32 [#allocation5], 4
      %s50 = int_to_ptr.vmem [resolvable:$true] %s49
      %52 = dma.vmem_to_hbm [thread:$0]  %s50, 128, %s2, [#allocation4]
    $region17: #{tpu_custom_call.1} parent=1 // pred_fallthru
      _
    // Predicated region
    $region18: #{tpu_custom_call.1} parent=1 // pred_check
      _
    $region19: #{tpu_custom_call.1} parent=1 // pred_check_branch
      %54 = sbr.rel (0) target = $region21
    $region20: #{tpu_custom_call.1} parent=1 // pred_region
      %55 = dma.done [#allocation4], 128
    $region21: #{tpu_custom_call.1} parent=1 // pred_fallthru
      _
    %56 = vsyncpa [#allocation3], 1
    %57 = vsyncpa [#allocation4], 1

</llo_original>
